<compile_context>
chip_gen: v7x
topology: tpu7x:2x2x1
jax: 0.10.0
libtpu: 0.0.40
codegen_flags: <defaults>
</compile_context>

<pallas_src>
import functools

import jax
import jax.numpy as jnp
import numpy as np
from jax import lax
from jax.experimental import pallas as pl
from jax.experimental.pallas import tpu as pltpu


# ---------------------------------------------------------------------------
# Hardware query / capability probe
# ---------------------------------------------------------------------------

def _vmem_capacity_bytes():
    """Physical per-core VMEM; conservative 64 MiB (v7x) fallback."""
    try:
        info = pltpu.get_tpu_info()
        for attr in ("vmem_capacity_bytes", "vmem_size_bytes", "vmem_bytes"):
            cap = getattr(info, attr, None)
            if cap:
                return int(cap)
    except Exception:
        pass
    return 64 * 2**20


@functools.lru_cache(maxsize=None)
def _supports_single_buffering():
    """Probe pipeline_mode=pl.Buffered(1) support (portability guard)."""
    try:
        with jax.ensure_compile_time_eval():
            def k(x_ref, o_ref):
                o_ref[...] = x_ref[...]
            f = pl.pallas_call(
                k,
                out_shape=jax.ShapeDtypeStruct((8, 128), jnp.float32),
                grid=(1,),
                in_specs=[pl.BlockSpec((8, 128), lambda i: (0, 0),
                                       pipeline_mode=pl.Buffered(1))],
                out_specs=pl.BlockSpec((8, 128), lambda i: (0, 0)),
            )
            jax.block_until_ready(f(jnp.zeros((8, 128), jnp.float32)))
        return True
    except Exception:
        return False


def _const_spec(block_shape, index_map):
    """BlockSpec for blocks whose index is constant (or only changes on the slow
    batch axis): single-buffer them to save the second VMEM buffer."""
    if _supports_single_buffering():
        return pl.BlockSpec(block_shape, index_map, pipeline_mode=pl.Buffered(1))
    return pl.BlockSpec(block_shape, index_map)


# ---------------------------------------------------------------------------
# Kernels
# ---------------------------------------------------------------------------

def _tablock_fused_kernel(x_ref, xr_ref, wqkv_ref, bqkv_ref, out_ref,
                          q_s, k_s, v_s):
    """Grid (B, C//tc).  At ci == 0: QKV projection into persistent VMEM scratch
    (three direct dots; no (C,3N) temporary, no lane-unaligned unpack).  Per
    tile: attention over tc query rows; the epilogue transpose is folded into
    the PV matmul (y^T computed directly) and fused with the residual add in the
    transposed (N, C) layout."""
    ci = pl.program_id(1)
    tc = out_ref.shape[2]

    @pl.when(ci == 0)
    def _():
        xb = x_ref[0].astype(wqkv_ref.dtype)                            # (C, N)
        q_s[...] = (jnp.dot(xb, wqkv_ref[0],
                            preferred_element_type=jnp.float32)
                    + bqkv_ref[0]).astype(q_s.dtype)                    # pre-scaled q
        k_s[...] = (jnp.dot(xb, wqkv_ref[1],
                            preferred_element_type=jnp.float32)
                    + bqkv_ref[1]).astype(k_s.dtype)
        v_s[...] = (jnp.dot(xb, wqkv_ref[2],
                            preferred_element_type=jnp.float32)
                    + bqkv_ref[2]).astype(v_s.dtype)

    align = 128 if tc % 128 == 0 else (8 if tc % 8 == 0 else 1)
    row0 = ci * tc
    if align > 1:
        row0 = pl.multiple_of(row0, align)
    q_t = q_s[pl.ds(row0, tc), :]                                       # (tc, N)

    # attn = q_scaled @ k^T  (contract over N; no transpose materialized).
    attn = lax.dot_general(q_t, k_s[...], (((1,), (1,)), ((), ())),
                           preferred_element_type=jnp.float32)          # (tc, C)
    attn = attn - jnp.max(attn, axis=-1, keepdims=True)
    p = jnp.exp(attn)
    p = p * pl.reciprocal(jnp.sum(p, axis=-1, keepdims=True), approx=False)

    # y^T computed directly on the MXU (no XLU transpose of a (tc, N) tile).
    y_t = lax.dot_general(v_s[...], p.astype(v_s.dtype),
                          (((0,), (1,)), ((), ())),
                          preferred_element_type=jnp.float32)           # (N, tc)
    out_ref[0] = (y_t + xr_ref[0].astype(jnp.float32)).astype(out_ref.dtype)


def _tablock_attn_kernel(q_ref, k_ref, v_ref, xr_ref, out_ref):
    """Hoisted-QKV variant: q/k/v are inputs (q pre-scaled).  No scratch carry,
    so both grid axes are 'parallel' (both v7x TensorCores get work at B == 1)."""
    attn = lax.dot_general(q_ref[0], k_ref[0], (((1,), (1,)), ((), ())),
                           preferred_element_type=jnp.float32)          # (tc, C)
    attn = attn - jnp.max(attn, axis=-1, keepdims=True)
    p = jnp.exp(attn)
    p = p * pl.reciprocal(jnp.sum(p, axis=-1, keepdims=True), approx=False)
    y_t = lax.dot_general(v_ref[0], p.astype(v_ref.dtype),
                          (((0,), (1,)), ((), ())),
                          preferred_element_type=jnp.float32)           # (N, tc)
    out_ref[0] = (y_t + xr_ref[0].astype(jnp.float32)).astype(out_ref.dtype)


# ---------------------------------------------------------------------------
# Sizing helpers
# ---------------------------------------------------------------------------

def _estimate_vmem_fused(C, N, tc, x_isz, c_isz, out_isz, const_bufs):
    blocks = (const_bufs * C * N * x_isz          # x block
              + 2 * N * tc * x_isz                # xr tile (double-buffered)
              + 2 * N * tc * out_isz)             # out tile (double-buffered)
    weights = const_bufs * (3 * N * N + 3 * N) * c_isz
    scratch = 3 * C * N * c_isz                   # persistent q/k/v
    interm = (2 * tc * C + N * tc + C * N) * 4    # attn/p, y^T, one dot temp (f32)
    return blocks + weights + scratch + interm


def _estimate_vmem_hoisted(C, N, tc, x_isz, c_isz, out_isz, const_bufs):
    blocks = (2 * tc * N * c_isz                  # q tile (double-buffered)
              + const_bufs * 2 * C * N * c_isz    # k + v
              + 2 * N * tc * x_isz                # xr tile
              + 2 * N * tc * out_isz)             # out tile
    interm = (2 * tc * C + N * tc) * 4
    return blocks + interm


def _choose_tc(C, vmem_cap, est_fn):
    """Lane-dense (multiple of 128) query-row tile that fits the VMEM budget;
    prefer 256 on 128 MiB parts, drop to 128 when tight (v7x), else full C."""
    if C % 128 != 0:
        return C
    budget = int(0.85 * vmem_cap) - 8 * 2**20
    opts = [256, 128] if C % 256 == 0 else [128]
    for tc in opts:
        if est_fn(tc) <= budget:
            return tc
    return opts[-1]


def _vmem_limit_bytes(estimate, cap):
    # Respect physical VMEM (64 MiB on v7x); leave headroom for compiler scratch.
    return int(min(int(0.85 * cap), max(32 * 2**20, estimate + 8 * 2**20)))


# ---------------------------------------------------------------------------
# Parameter packing (do once at weight-load time, outside the jitted forward)
# ---------------------------------------------------------------------------

def pack_tablock_params(wq, bq, wk, bk, wv, bv, compute_dtype=jnp.float32):
    """Pack the three Linear(dim, dim) projections.  Weights are stored as
    (N_in, N_out) (i.e. torch weight.T).  norm_fact = N**-0.5 is folded into the
    q projection.  compute_dtype=jnp.bfloat16 enables the MXU-native path
    (needs a relaxed parity tolerance)."""
    N = wq.shape[0]
    norm_fact = float(N) ** -0.5
    wqkv = jnp.stack([wq * norm_fact, wk, wv], axis=0).astype(compute_dtype)     # (3, N, N)
    bqkv = jnp.stack([bq * norm_fact, bk, bv], axis=0).reshape(3, 1, N)
    return wqkv, bqkv.astype(compute_dtype)


# ---------------------------------------------------------------------------
# Forward
# ---------------------------------------------------------------------------

def tablock_forward(x, wqkv, bqkv, *, hoist_qkv=None):
    """TABlock forward.  x: (B, C, N); wqkv/bqkv from pack_tablock_params.
    proj_drop is identity (eval mode).  hoist_qkv=None auto-selects: at B == 1
    the QKV projection is hoisted to a plain XLA matmul so the attention grid
    has no scratch carry and both axes are 'parallel' (v7x two-core case)."""
    B, C, N = x.shape
    compute_dtype = wqkv.dtype
    if hoist_qkv is None:
        hoist_qkv = (B == 1)

    # Row-major reshape (bitcast): residual operand in the transposed-output
    # (B, N, C) layout so the epilogue is a straight add + lane-dense store.
    xr = x.reshape(B, N, C)

    cap = _vmem_capacity_bytes()
    const_bufs = 1 if _supports_single_buffering() else 2
    x_isz = jnp.dtype(x.dtype).itemsize
    c_isz = jnp.dtype(compute_dtype).itemsize
    out_isz = x_isz

    if hoist_qkv:
        est_fn = lambda t: _estimate_vmem_hoisted(C, N, t, x_isz, c_isz, out_isz, const_bufs)
        tc = _choose_tc(C, cap, est_fn)
        n_ct = C // tc

        # QKV projection as a plain XLA matmul; the attention kernel stays
        # compute-bound, so the extra HBM round trip for q/k/v is cheap.
        qkv = jnp.einsum("bcn,knm->kbcm", x.astype(compute_dtype), wqkv,
                         preferred_element_type=jnp.float32)
        qkv = (qkv + bqkv[:, None]).astype(compute_dtype)                # (3, B, C, N)

        out_nc = pl.pallas_call(
            _tablock_attn_kernel,
            out_shape=jax.ShapeDtypeStruct((B, N, C), x.dtype),
            grid_spec=pltpu.PrefetchScalarGridSpec(
                num_scalar_prefetch=0,
                grid=(B, n_ct),
                in_specs=[
                    pl.BlockSpec((1, tc, N), lambda b, ci: (b, ci, 0)),   # q (pre-scaled)
                    _const_spec((1, C, N), lambda b, ci: (b, 0, 0)),      # k
                    _const_spec((1, C, N), lambda b, ci: (b, 0, 0)),      # v
                    pl.BlockSpec((1, N, tc), lambda b, ci: (b, 0, ci)),   # x viewed (N, C)
                ],
                out_specs=pl.BlockSpec((1, N, tc), lambda b, ci: (b, 0, ci)),
            ),
            compiler_params=pltpu.CompilerParams(
                dimension_semantics=("parallel", "parallel"),
                vmem_limit_bytes=_vmem_limit_bytes(est_fn(tc), cap),
            ),
        )(qkv[0], qkv[1], qkv[2], xr)
    else:
        est_fn = lambda t: _estimate_vmem_fused(C, N, t, x_isz, c_isz, out_isz, const_bufs)
        tc = _choose_tc(C, cap, est_fn)
        n_ct = C // tc

        out_nc = pl.pallas_call(
            _tablock_fused_kernel,
            out_shape=jax.ShapeDtypeStruct((B, N, C), x.dtype),
            grid_spec=pltpu.PrefetchScalarGridSpec(
                num_scalar_prefetch=0,
                grid=(B, n_ct),
                in_specs=[
                    _const_spec((1, C, N), lambda b, ci: (b, 0, 0)),      # x (per batch)
                    pl.BlockSpec((1, N, tc), lambda b, ci: (b, 0, ci)),   # x viewed (N, C)
                    _const_spec((3, N, N), lambda b, ci: (0, 0, 0)),      # packed Wqkv
                    _const_spec((3, 1, N), lambda b, ci: (0, 0, 0)),      # packed bias
                ],
                out_specs=pl.BlockSpec((1, N, tc), lambda b, ci: (b, 0, ci)),
                scratch_shapes=[
                    pltpu.VMEM((C, N), compute_dtype),   # q (pre-scaled)
                    pltpu.VMEM((C, N), compute_dtype),   # k
                    pltpu.VMEM((C, N), compute_dtype),   # v
                ],
            ),
            compiler_params=pltpu.CompilerParams(
                dimension_semantics=("parallel", "arbitrary"),
                vmem_limit_bytes=_vmem_limit_bytes(est_fn(tc), cap),
            ),
        )(x, xr, wqkv, bqkv)

    # Row-major reshape (bitcast) back to (B, C, N).
    return out_nc.reshape(B, C, N)


def tablock_ref(x, wq, bq, wk, bk, wv, bv):
    """Pure-JAX reference mirroring the PyTorch forward exactly (eval mode)."""
    B, C, N = x.shape
    q = x @ wq + bq
    k = x @ wk + bk
    v = x @ wv + bv
    attn = (q @ jnp.swapaxes(k, -1, -2)) * (float(N) ** -0.5)
    attn = jax.nn.softmax(attn, axis=-1)
    y = attn @ v
    return jnp.transpose(y, (0, 2, 1)).reshape(B, C, N) + x


if __name__ == "__main__":
    key = jax.random.PRNGKey(0)
    B, C, N = 2, 8, 32        # dim == N for TABlock's Linear(dim, dim)
    ks = jax.random.split(key, 7)

    x = jax.random.normal(ks[0], (B, C, N), jnp.float32)
    # nn.Linear(dim, dim) params; weights already stored as (N_in, N_out).
    wq = jax.random.normal(ks[1], (N, N), jnp.float32) * 0.05
    wk = jax.random.normal(ks[2], (N, N), jnp.float32) * 0.05
    wv = jax.random.normal(ks[3], (N, N), jnp.float32) * 0.05
    bq = jax.random.normal(ks[4], (N,), jnp.float32) * 0.01
    bk = jax.random.normal(ks[5], (N,), jnp.float32) * 0.01
    bv = jax.random.normal(ks[6], (N,), jnp.float32) * 0.01

    ref = tablock_ref(x, wq, bq, wk, bk, wv, bv)

    # Prime the single-buffering capability probe eagerly (outside any jit).
    _supports_single_buffering()

    # f32 fused path (QKV in-kernel), parity at 1e-5.
    wqkv, bqkv = pack_tablock_params(wq, bq, wk, bk, wv, bv, jnp.float32)
    fwd = jax.jit(tablock_forward)
    out = jax.block_until_ready(fwd(x, wqkv, bqkv))
    assert out.shape == (B, C, N)
    np.testing.assert_allclose(np.asarray(out), np.asarray(ref),
                               rtol=1e-5, atol=1e-5)

    # Hoisted-QKV variant (the B == 1 / v7x two-TensorCore path), parity at 1e-5.
    fwd_hoist = jax.jit(functools.partial(tablock_forward, hoist_qkv=True))
    out1 = jax.block_until_ready(fwd_hoist(x[:1], wqkv, bqkv))
    np.testing.assert_allclose(np.asarray(out1), np.asarray(ref[:1]),
                               rtol=1e-5, atol=1e-5)

    # bf16 MXU path (relaxed tolerance; the perf knob for production sizes).
    wqkv16, bqkv16 = pack_tablock_params(wq, bq, wk, bk, wv, bv, jnp.bfloat16)
    out16 = jax.block_until_ready(fwd(x, wqkv16, bqkv16))
    np.testing.assert_allclose(np.asarray(out16), np.asarray(ref),
                               rtol=5e-2, atol=5e-2)

    print("KERNEL_OK")
</pallas_src>

<mosaic_0001>
module attributes {stable_mosaic.version = 11 : i64} {
  func.func @k(%arg0: i32, %arg1: memref<8x128xf32, #tpu.memory_space<vmem>>, %arg2: memref<8x128xf32, #tpu.memory_space<vmem>>) attributes {dimension_semantics = [#tpu.dimension_semantics<arbitrary>], iteration_bounds = array<i64: 1>, scalar_prefetch = 0 : i64, scratch_operands = 0 : i64, tpu.core_type = #tpu.core_type<tc>, window_params = [{pipeline_mode = #tpu.pipeline_mode<synchronous>, transform_indices = @transform_0, window_bounds = array<i64: 8, 128>}, {pipeline_mode = #tpu.pipeline_mode<synchronous>, transform_indices = @transform_1, window_bounds = array<i64: 8, 128>}]} {
    %c0 = arith.constant 0 : index
    %c0_0 = arith.constant 0 : index
    %0 = vector.load %arg1[%c0, %c0_0] : memref<8x128xf32, #tpu.memory_space<vmem>>, vector<8x128xf32>
    %c0_1 = arith.constant 0 : index
    %c0_2 = arith.constant 0 : index
    %1 = vector.load %arg2[%c0_1, %c0_2] : memref<8x128xf32, #tpu.memory_space<vmem>>, vector<8x128xf32>
    tpu.vector_store %arg2[%c0_1, %c0_2], %0 {strides = array<i32>} : memref<8x128xf32, #tpu.memory_space<vmem>>, vector<8x128xf32>,
    return
  }
  func.func @transform_0(%arg0: i32) -> (i32, i32) {
    %c0_i32 = arith.constant 0 : i32
    %c0_i32_0 = arith.constant 0 : i32
    %c0_i32_1 = arith.constant 0 : i32
    return %c0_i32, %c0_i32_0 : i32, i32
  }
  func.func @transform_1(%arg0: i32) -> (i32, i32) {
    %c0_i32 = arith.constant 0 : i32
    %c0_i32_0 = arith.constant 0 : i32
    %c0_i32_1 = arith.constant 0 : i32
    return %c0_i32, %c0_i32_0 : i32, i32
  }
}

module attributes {stable_mosaic.version = 11 : i64} {
  func.func @_tablock_fused_kernel(%arg0: i32, %arg1: i32, %arg2: memref<1x8x32xf32, #tpu.memory_space<vmem>>, %arg3: memref<1x32x8xf32, #tpu.memory_space<vmem>>, %arg4: memref<3x32x32xf32, #tpu.memory_space<vmem>>, %arg5: memref<3x1x32xf32, #tpu.memory_space<vmem>>, %arg6: memref<1x32x8xf32, #tpu.memory_space<vmem>>, %arg7: memref<8x32xf32, #tpu.memory_space<vmem>>, %arg8: memref<8x32xf32, #tpu.memory_space<vmem>>, %arg9: memref<8x32xf32, #tpu.memory_space<vmem>>) attributes {dimension_semantics = [#tpu.dimension_semantics<parallel>, #tpu.dimension_semantics<arbitrary>], iteration_bounds = array<i64: 2, 1>, scalar_prefetch = 0 : i64, scratch_operands = 3 : i64, tpu.core_type = #tpu.core_type<tc>, window_params = [{transform_indices = @transform_0, window_bounds = array<i64: 1, 8, 32>}, {transform_indices = @transform_1, window_bounds = array<i64: 1, 32, 8>}, {pipeline_mode = #tpu.pipeline_mode<synchronous>, transform_indices = @transform_2, window_bounds = array<i64: 3, 32, 32>}, {pipeline_mode = #tpu.pipeline_mode<synchronous>, transform_indices = @transform_3, window_bounds = array<i64: 3, 1, 32>}, {transform_indices = @transform_4, window_bounds = array<i64: 1, 32, 8>}]} {
    %c0_i32 = arith.constant 0 : i32
    %0 = arith.cmpi eq, %arg1, %c0_i32 : i32
    %1 = arith.extui %0 : i1 to i32
    %c0_i32_0 = arith.constant 0 : i32
    %2 = arith.cmpi ne, %1, %c0_i32_0 : i32
    scf.if %2 {
      %c0_14 = arith.constant 0 : index
      %c0_15 = arith.constant 0 : index
      %c0_16 = arith.constant 0 : index
      %27 = vector.load %arg2[%c0_14, %c0_15, %c0_16] : memref<1x8x32xf32, #tpu.memory_space<vmem>>, vector<1x8x32xf32>
      %28 = vector.shape_cast %27 : vector<1x8x32xf32> to vector<8x32xf32>
      %c0_17 = arith.constant 0 : index
      %c0_18 = arith.constant 0 : index
      %c0_19 = arith.constant 0 : index
      %29 = vector.load %arg4[%c0_17, %c0_18, %c0_19] : memref<3x32x32xf32, #tpu.memory_space<vmem>>, vector<1x32x32xf32>
      %30 = vector.shape_cast %29 : vector<1x32x32xf32> to vector<32x32xf32>
      %cst_20 = arith.constant dense<0.000000e+00> : vector<8x32xf32>
      %31 = tpu.matmul %28, %30, %cst_20 {dimension_numbers = #tpu.dot_dimension_numbers<[1], [0], [0], [1], [0, 0, 1, 1], [], []>} : vector<8x32xf32>, vector<32x32xf32>, vector<8x32xf32> -> vector<8x32xf32>
      %c0_21 = arith.constant 0 : index
      %c0_22 = arith.constant 0 : index
      %c0_23 = arith.constant 0 : index
      %32 = vector.load %arg5[%c0_21, %c0_22, %c0_23] : memref<3x1x32xf32, #tpu.memory_space<vmem>>, vector<1x1x32xf32>
      %33 = vector.shape_cast %32 : vector<1x1x32xf32> to vector<1x32xf32>
      %34 = vector.broadcast %33 : vector<1x32xf32> to vector<8x32xf32>
      %35 = arith.addf %31, %34 : vector<8x32xf32>
      %c0_24 = arith.constant 0 : index
      %c0_25 = arith.constant 0 : index
      %36 = vector.load %arg7[%c0_24, %c0_25] : memref<8x32xf32, #tpu.memory_space<vmem>>, vector<8x32xf32>
      tpu.vector_store %arg7[%c0_24, %c0_25], %35 {strides = array<i32>} : memref<8x32xf32, #tpu.memory_space<vmem>>, vector<8x32xf32>,
      %c1 = arith.constant 1 : index
      %c0_26 = arith.constant 0 : index
      %c0_27 = arith.constant 0 : index
      %37 = vector.load %arg4[%c1, %c0_26, %c0_27] : memref<3x32x32xf32, #tpu.memory_space<vmem>>, vector<1x32x32xf32>
      %38 = vector.shape_cast %37 : vector<1x32x32xf32> to vector<32x32xf32>
      %cst_28 = arith.constant dense<0.000000e+00> : vector<8x32xf32>
      %39 = tpu.matmul %28, %38, %cst_28 {dimension_numbers = #tpu.dot_dimension_numbers<[1], [0], [0], [1], [0, 0, 1, 1], [], []>} : vector<8x32xf32>, vector<32x32xf32>, vector<8x32xf32> -> vector<8x32xf32>
      %c1_29 = arith.constant 1 : index
      %c0_30 = arith.constant 0 : index
      %c0_31 = arith.constant 0 : index
      %40 = vector.load %arg5[%c1_29, %c0_30, %c0_31] : memref<3x1x32xf32, #tpu.memory_space<vmem>>, vector<1x1x32xf32>
      %41 = vector.shape_cast %40 : vector<1x1x32xf32> to vector<1x32xf32>
      %42 = vector.broadcast %41 : vector<1x32xf32> to vector<8x32xf32>
      %43 = arith.addf %39, %42 : vector<8x32xf32>
      %c0_32 = arith.constant 0 : index
      %c0_33 = arith.constant 0 : index
      %44 = vector.load %arg8[%c0_32, %c0_33] : memref<8x32xf32, #tpu.memory_space<vmem>>, vector<8x32xf32>
      tpu.vector_store %arg8[%c0_32, %c0_33], %43 {strides = array<i32>} : memref<8x32xf32, #tpu.memory_space<vmem>>, vector<8x32xf32>,
      %c2 = arith.constant 2 : index
      %c0_34 = arith.constant 0 : index
      %c0_35 = arith.constant 0 : index
      %45 = vector.load %arg4[%c2, %c0_34, %c0_35] : memref<3x32x32xf32, #tpu.memory_space<vmem>>, vector<1x32x32xf32>
      %46 = vector.shape_cast %45 : vector<1x32x32xf32> to vector<32x32xf32>
      %cst_36 = arith.constant dense<0.000000e+00> : vector<8x32xf32>
      %47 = tpu.matmul %28, %46, %cst_36 {dimension_numbers = #tpu.dot_dimension_numbers<[1], [0], [0], [1], [0, 0, 1, 1], [], []>} : vector<8x32xf32>, vector<32x32xf32>, vector<8x32xf32> -> vector<8x32xf32>
      %c2_37 = arith.constant 2 : index
      %c0_38 = arith.constant 0 : index
      %c0_39 = arith.constant 0 : index
      %48 = vector.load %arg5[%c2_37, %c0_38, %c0_39] : memref<3x1x32xf32, #tpu.memory_space<vmem>>, vector<1x1x32xf32>
      %49 = vector.shape_cast %48 : vector<1x1x32xf32> to vector<1x32xf32>
      %50 = vector.broadcast %49 : vector<1x32xf32> to vector<8x32xf32>
      %51 = arith.addf %47, %50 : vector<8x32xf32>
      %c0_40 = arith.constant 0 : index
      %c0_41 = arith.constant 0 : index
      %52 = vector.load %arg9[%c0_40, %c0_41] : memref<8x32xf32, #tpu.memory_space<vmem>>, vector<8x32xf32>
      tpu.vector_store %arg9[%c0_40, %c0_41], %51 {strides = array<i32>} : memref<8x32xf32, #tpu.memory_space<vmem>>, vector<8x32xf32>,
    } else {
    }
    %c8_i32 = arith.constant 8 : i32
    %3 = arith.muli %arg1, %c8_i32 : i32
    %4 = tpu.assume_multiple %3, 8 : i32
    %5 = arith.index_cast %4 : i32 to index
    %c0 = arith.constant 0 : index
    %6 = vector.load %arg7[%5, %c0] : memref<8x32xf32, #tpu.memory_space<vmem>>, vector<8x32xf32>
    %c0_1 = arith.constant 0 : index
    %c0_2 = arith.constant 0 : index
    %7 = vector.load %arg8[%c0_1, %c0_2] : memref<8x32xf32, #tpu.memory_space<vmem>>, vector<8x32xf32>
    %cst = arith.constant dense<0.000000e+00> : vector<8x8xf32>
    %8 = tpu.matmul %6, %7, %cst {dimension_numbers = #tpu.dot_dimension_numbers<[1], [1], [0], [0], [0, 0, 1, 0], [], []>} : vector<8x32xf32>, vector<8x32xf32>, vector<8x8xf32> -> vector<8x8xf32>
    %cst_3 = arith.constant dense<0xFF800000> : vector<8xf32>
    %9 = vector.multi_reduction <maximumf>, %8, %cst_3 [1] : vector<8x8xf32> to vector<8xf32>
    %10 = vector.shape_cast %9 : vector<8xf32> to vector<8x1xf32>
    %11 = vector.broadcast %10 : vector<8x1xf32> to vector<8x8xf32>
    %12 = arith.subf %8, %11 : vector<8x8xf32>
    %13 = math.exp %12 : vector<8x8xf32>
    %cst_4 = arith.constant dense<0.000000e+00> : vector<8xf32>
    %14 = vector.multi_reduction <add>, %13, %cst_4 [1] : vector<8x8xf32> to vector<8xf32>
    %15 = vector.shape_cast %14 : vector<8xf32> to vector<8x1xf32>
    %16 = tpu.reciprocal %15 : vector<8x1xf32> -> vector<8x1xf32>
    %17 = vector.broadcast %16 : vector<8x1xf32> to vector<8x8xf32>
    %18 = arith.mulf %13, %17 : vector<8x8xf32>
    %c0_5 = arith.constant 0 : index
    %c0_6 = arith.constant 0 : index
    %19 = vector.load %arg9[%c0_5, %c0_6] : memref<8x32xf32, #tpu.memory_space<vmem>>, vector<8x32xf32>
    %cst_7 = arith.constant dense<0.000000e+00> : vector<32x8xf32>
    %20 = tpu.matmul %19, %18, %cst_7 {dimension_numbers = #tpu.dot_dimension_numbers<[0], [1], [1], [0], [0, 1, 1, 0], [], []>} : vector<8x32xf32>, vector<8x8xf32>, vector<32x8xf32> -> vector<32x8xf32>
    %c0_8 = arith.constant 0 : index
    %c0_9 = arith.constant 0 : index
    %c0_10 = arith.constant 0 : index
    %21 = vector.load %arg3[%c0_8, %c0_9, %c0_10] : memref<1x32x8xf32, #tpu.memory_space<vmem>>, vector<1x32x8xf32>
    %22 = vector.shape_cast %21 : vector<1x32x8xf32> to vector<32x8xf32>
    %23 = arith.addf %20, %22 : vector<32x8xf32>
    %c0_11 = arith.constant 0 : index
    %c0_12 = arith.constant 0 : index
    %c0_13 = arith.constant 0 : index
    %24 = vector.load %arg6[%c0_11, %c0_12, %c0_13] : memref<1x32x8xf32, #tpu.memory_space<vmem>>, vector<1x32x8xf32>
    %25 = vector.shape_cast %24 : vector<1x32x8xf32> to vector<32x8xf32>
    %26 = vector.shape_cast %23 : vector<32x8xf32> to vector<1x32x8xf32>
    tpu.vector_store %arg6[%c0_11, %c0_12, %c0_13], %26 {strides = array<i32>} : memref<1x32x8xf32, #tpu.memory_space<vmem>>, vector<1x32x8xf32>,
    return
  }
  func.func @transform_0(%arg0: i32, %arg1: i32) -> (i32, i32, i32) {
    %c0_i32 = arith.constant 0 : i32
    %c0_i32_0 = arith.constant 0 : i32
    %c0_i32_1 = arith.constant 0 : i32
    return %arg0, %c0_i32, %c0_i32_0 : i32, i32, i32
  }
  func.func @transform_1(%arg0: i32, %arg1: i32) -> (i32, i32, i32) {
    %c0_i32 = arith.constant 0 : i32
    %c0_i32_0 = arith.constant 0 : i32
    return %arg0, %c0_i32, %arg1 : i32, i32, i32
  }
  func.func @transform_2(%arg0: i32, %arg1: i32) -> (i32, i32, i32) {
    %c0_i32 = arith.constant 0 : i32
    %c0_i32_0 = arith.constant 0 : i32
    %c0_i32_1 = arith.constant 0 : i32
    %c0_i32_2 = arith.constant 0 : i32
    return %c0_i32, %c0_i32_0, %c0_i32_1 : i32, i32, i32
  }
  func.func @transform_3(%arg0: i32, %arg1: i32) -> (i32, i32, i32) {
    %c0_i32 = arith.constant 0 : i32
    %c0_i32_0 = arith.constant 0 : i32
    %c0_i32_1 = arith.constant 0 : i32
    %c0_i32_2 = arith.constant 0 : i32
    return %c0_i32, %c0_i32_0, %c0_i32_1 : i32, i32, i32
  }
  func.func @transform_4(%arg0: i32, %arg1: i32) -> (i32, i32, i32) {
    %c0_i32 = arith.constant 0 : i32
    %c0_i32_0 = arith.constant 0 : i32
    return %arg0, %c0_i32, %arg1 : i32, i32, i32
  }
}

</mosaic_0001>

<llo_original>
// kernel: tpu_custom_call.1
$region0: #{tpu_custom_call.1}
  #allocation0 [shape = 'u32[]', space=smem, size = 0x4, offset = 0x4, fixed_abs, tag = 'smem constant byte address 0x4 - core index']
  #allocation1 [shape = 'u32[144,128]{1,0:T(1,128)}', space=vmem, size = 0x12000, scoped, tag = 'internal scratch']
  %s0 = inlined_call_operand.hbm [shape: f32[8,128], index: 0, kind: input, shape index: {}]
  %s1 = inlined_call_operand.hbm [shape: f32[8,128], index: 1, kind: output, shape index: {}]
  %s2 = sld [smem:[#allocation0]]
  $region18: #{tpu_custom_call.1} parent=0
    _
  %s4 = ssub.s32 1, %s2
  %s5 = scalar_select 0, %s4, %s2
  $region1: #{tpu_custom_call.1} parent=0
    #allocation2 [shape = 'u8[4096]{0}', space=vmem, size = 0x1000, scoped, tag = 'input window, operand 0, single buffered']
    #allocation3 [shape = 's32[1]{0}', space=sflag, size = 0x4, scoped, tag = 'scoped memory for tpu_custom_call.1']
    #allocation4 [shape = 's32[1]{0}', space=sflag, size = 0x4, scoped, tag = 'scoped memory for tpu_custom_call.1']
    #allocation5 [shape = 'u8[4096]{0}', space=vmem, size = 0x1000, scoped, tag = 'output window, operand 0, single buffered']
    %6 = vsyncpa [#allocation3], 0
    %7 = vsyncpa [#allocation4], 0
    // Predicated region
    $region2: #{tpu_custom_call.1} parent=1 // pred_check
      _
    $region3: #{tpu_custom_call.1} parent=1 // pred_check_branch
      %9 = sbr.rel (0) target = $region5
    $region4: #{tpu_custom_call.1} parent=1 // pred_region
      %s11 = ssub.s32 128, 128
      %12 = vsyncadd [#allocation3], %s11
      %s14 = sshll.u32 [#allocation2], 4
      %s15 = int_to_ptr.vmem [resolvable:$true] %s14
      %17 = dma.hbm_to_vmem [thread:$0]  %s0, 128, %s15, [#allocation3]
    $region5: #{tpu_custom_call.1} parent=1 // pred_fallthru
      _
    // Predicated region
    $region6: #{tpu_custom_call.1} parent=1 // pred_check
      _
    $region7: #{tpu_custom_call.1} parent=1 // pred_check_branch
      %19 = sbr.rel (0) target = $region9
    $region8: #{tpu_custom_call.1} parent=1 // pred_region
      %20 = dma.done [#allocation3], 128
    $region9: #{tpu_custom_call.1} parent=1 // pred_fallthru
      _
    %v21 = vld [vmem:[#allocation2] sm:$0xff]
    %22 = vst [vmem:[#allocation5] sm:$0xff] %v21
    // Predicated region
    $region10: #{tpu_custom_call.1} parent=1 // pred_check
      _
    $region11: #{tpu_custom_call.1} parent=1 // pred_check_branch
      %24 = sbr.rel (0) target = $region13
    $region12: #{tpu_custom_call.1} parent=1 // pred_region
      %s26 = ssub.s32 128, 128
      %27 = vsyncadd [#allocation4], %s26
      %s29 = sshll.u32 [#allocation5], 4
      %s30 = int_to_ptr.vmem [resolvable:$true] %s29
      %32 = dma.vmem_to_hbm [thread:$0]  %s30, 128, %s1, [#allocation4]
    $region13: #{tpu_custom_call.1} parent=1 // pred_fallthru
      _
    // Predicated region
    $region14: #{tpu_custom_call.1} parent=1 // pred_check
      _
    $region15: #{tpu_custom_call.1} parent=1 // pred_check_branch
      %34 = sbr.rel (0) target = $region17
    $region16: #{tpu_custom_call.1} parent=1 // pred_region
      %35 = dma.done [#allocation4], 128
    $region17: #{tpu_custom_call.1} parent=1 // pred_fallthru
      _
    %36 = vsyncpa [#allocation3], 1
    %37 = vsyncpa [#allocation4], 1

// kernel: tablock_forward.1
$region0: #{tablock_forward.1}
  #allocation0 [shape = 'u32[]', space=smem, size = 0x4, offset = 0x4, fixed_abs, tag = 'smem constant byte address 0x4 - core index']
  #allocation1 [shape = 'u32[144,128]{1,0:T(1,128)}', space=vmem, size = 0x12000, scoped, tag = 'internal scratch']
  #allocation2 [shape = 'f32[8,32]{1,0:T(8,128)}', space=vmem, size = 0x1000, scoped, tag = 'scratch operand']
  #allocation3 [shape = 'f32[8,32]{1,0:T(8,128)}', space=vmem, size = 0x1000, scoped, tag = 'scratch operand']
  #allocation4 [shape = 'f32[8,32]{1,0:T(8,128)}', space=vmem, size = 0x1000, scoped, tag = 'scratch operand']
  %s0 = inlined_call_operand.vmem [shape: f32[2,8,32], index: 0, kind: input, shape index: {}]
  %s1 = inlined_call_operand.vmem [shape: f32[2,32,8], index: 1, kind: input, shape index: {}]
  %s2 = inlined_call_operand.hbm [shape: f32[3,32,32], index: 2, kind: input, shape index: {}]
  %s3 = inlined_call_operand.vmem [shape: f32[3,1,32], index: 3, kind: input, shape index: {}]
  %s4 = inlined_call_operand.vmem [shape: f32[2,32,8], index: 4, kind: output, shape index: {}]
  %s5 = sld [smem:[#allocation0]]
  $region57: #{tablock_forward.1} parent=0
    _
  %s7 = ssub.s32 1, %s5
  %s8 = scalar_select 0, %s7, %s5
  $region1: #{tablock_forward.1} parent=0
    #allocation5 [shape = 'u8[49152]{0}', space=vmem, size = 0xc000, scoped, tag = 'input window, operand 2, single buffered']
    #allocation6 [shape = 's32[2]{0}', space=sflag, size = 0x8, scoped, tag = 'scoped memory for tablock_forward.1']
    %9 = vsyncpa [#allocation6], 0
    loop: start=0, step=1, limit=4
    $region2: #{tablock_forward.1} parent=1 // loop_pre_header
      _
    $region3: #{tablock_forward.1} parent=1 // loop_header
      %s11 = sphi 0, %s15
      %p12 = scmp.ge.s32.totalorder %s11, 4
      %s18 = sphi 0, %s30
      %s19 = sphi 0, %s26
      %s20 = sphi 0, %s18
      %s21 = sphi 0, %s19
      %s22 = sphi 0, %s20
      %s23 = sphi 0, %s21
      %s33 = sphi 0, %s35
      %s36 = sphi 0, %s33
      %s37 = sphi 0, %s36
      %s53 = sphi 0, %s37
      %s61 = sphi 0, %s63
      %s64 = sphi 0, %s61
      %s65 = sphi 0, %s64
      %s81 = sphi 0, %s65
      %s85 = sphi 0, %s85
      %s87 = sphi 0, %s85
      %s88 = sphi 0, %s87
      %s102 = sphi 0, %s88
      %s106 = sphi 0, %s106
      %s108 = sphi 0, %s106
      %s109 = sphi 0, %s108
      %s123 = sphi 0, %s109
      %s131 = sphi 0, %s133
      %s134 = sphi 0, %s131
      %s135 = sphi 0, %s134
      %s151 = sphi 0, %s135
    $region4: #{tablock_forward.1} parent=1 // loop_header_branch
      %14 = sbr.rel (%p12) target = $region8
    $region5: #{tablock_forward.1} parent=1 // loop_body
      %s16 = ssub.s32 %s11, 1
      %s17 = ssub.s32 %s11, 2
      %s24 = sadd.s32 1, %s19
      %p25 = scmp.ge.s32.totalorder %s24, 1
      %s26 = scalar_select %p25, 0, %s24
      %s27 = sadd.s32 1, %s18
      %s28 = scalar_select %p25, %s27, %s18
      %p29 = scmp.ge.s32.totalorder %s28, 2
      %s30 = scalar_select %p29, 0, %s28
      %s31 = ssub.s32 %s18, %s30
      %p32 = scmp.eq.s32.totalorder %s31, 0
      %s34 = sadd.s32 %s33, 1
      %s35 = scalar_select %p32, %s33, %s34
      %p38 = pneg %p32
      %p39 = scmp.eq.s32.totalorder %s11, 1
      %p40 = por %p38, %p39
      %p41 = scmp.ne.s32.totalorder %s33, %s36
      %p42 = scmp.eq.s32.totalorder %s11, 0
      %p43 = por %p41, %p42
      %p44 = scmp.ne.s32.totalorder %s33, %s36
      %p45 = scmp.eq.s32.totalorder %s16, 1
      %p46 = por %p44, %p45
      %p47 = scmp.ne.s32.totalorder %s36, %s37
      %p48 = scmp.eq.s32.totalorder %s16, 0
      %p49 = por %p47, %p48
      %p50 = scmp.ne.s32.totalorder %s36, %s37
      %p51 = scmp.eq.s32.totalorder %s17, 1
      %p52 = por %p50, %p51
      %p54 = scmp.ne.s32.totalorder %s37, %s53
      %p55 = scmp.eq.s32.totalorder %s17, 0
      %p56 = por %p54, %p55
      %s57 = ssub.s32 %s18, %s30
      %s58 = ssub.s32 %s19, %s26
      %s59 = sor.u32 %s57, %s58
      %p60 = scmp.eq.s32.totalorder %s59, 0
      %s62 = sadd.s32 %s61, 1
      %s63 = scalar_select %p60, %s61, %s62
      %p66 = pneg %p60
      %p67 = scmp.eq.s32.totalorder %s11, 1
      %p68 = por %p66, %p67
      %p69 = scmp.ne.s32.totalorder %s61, %s64
      %p70 = scmp.eq.s32.totalorder %s11, 0
      %p71 = por %p69, %p70
      %p72 = scmp.ne.s32.totalorder %s61, %s64
      %p73 = scmp.eq.s32.totalorder %s16, 1
      %p74 = por %p72, %p73
      %p75 = scmp.ne.s32.totalorder %s64, %s65
      %p76 = scmp.eq.s32.totalorder %s16, 0
      %p77 = por %p75, %p76
      %p78 = scmp.ne.s32.totalorder %s64, %s65
      %p79 = scmp.eq.s32.totalorder %s17, 1
      %p80 = por %p78, %p79
      %p82 = scmp.ne.s32.totalorder %s65, %s81
      %p83 = scmp.eq.s32.totalorder %s17, 0
      %p84 = por %p82, %p83
      %s86 = sadd.s32 %s85, 1
      %p89 = scmp.eq.s32.totalorder %s11, 1
      %p90 = scmp.ne.s32.totalorder %s85, %s87
      %p91 = scmp.eq.s32.totalorder %s11, 0
      %p92 = por %p90, %p91
      %p93 = scmp.ne.s32.totalorder %s85, %s87
      %p94 = scmp.eq.s32.totalorder %s16, 1
      %p95 = por %p93, %p94
      %p96 = scmp.ne.s32.totalorder %s87, %s88
      %p97 = scmp.eq.s32.totalorder %s16, 0
      %p98 = por %p96, %p97
      %p99 = scmp.ne.s32.totalorder %s87, %s88
      %p100 = scmp.eq.s32.totalorder %s17, 1
      %p101 = por %p99, %p100
      %p103 = scmp.ne.s32.totalorder %s88, %s102
      %p104 = scmp.eq.s32.totalorder %s17, 0
      %p105 = por %p103, %p104
      %s107 = sadd.s32 %s106, 1
      %p110 = scmp.eq.s32.totalorder %s11, 1
      %p111 = scmp.ne.s32.totalorder %s106, %s108
      %p112 = scmp.eq.s32.totalorder %s11, 0
      %p113 = por %p111, %p112
      %p114 = scmp.ne.s32.totalorder %s106, %s108
      %p115 = scmp.eq.s32.totalorder %s16, 1
      %p116 = por %p114, %p115
      %p117 = scmp.ne.s32.totalorder %s108, %s109
      %p118 = scmp.eq.s32.totalorder %s16, 0
      %p119 = por %p117, %p118
      %p120 = scmp.ne.s32.totalorder %s108, %s109
      %p121 = scmp.eq.s32.totalorder %s17, 1
      %p122 = por %p120, %p121
      %p124 = scmp.ne.s32.totalorder %s109, %s123
      %p125 = scmp.eq.s32.totalorder %s17, 0
      %p126 = por %p124, %p125
      %s127 = ssub.s32 %s18, %s30
      %s128 = ssub.s32 %s19, %s26
      %s129 = sor.u32 %s127, %s128
      %p130 = scmp.eq.s32.totalorder %s129, 0
      %s132 = sadd.s32 %s131, 1
      %s133 = scalar_select %p130, %s131, %s132
      %p136 = pneg %p130
      %p137 = scmp.eq.s32.totalorder %s11, 1
      %p138 = por %p136, %p137
      %p139 = scmp.ne.s32.totalorder %s131, %s134
      %p140 = scmp.eq.s32.totalorder %s11, 0
      %p141 = por %p139, %p140
      %p142 = scmp.ne.s32.totalorder %s131, %s134
      %p143 = scmp.eq.s32.totalorder %s16, 1
      %p144 = por %p142, %p143
      %p145 = scmp.ne.s32.totalorder %s134, %s135
      %p146 = scmp.eq.s32.totalorder %s16, 0
      %p147 = por %p145, %p146
      %p148 = scmp.ne.s32.totalorder %s134, %s135
      %p149 = scmp.eq.s32.totalorder %s17, 1
      %p150 = por %p148, %p149
      %p152 = scmp.ne.s32.totalorder %s135, %s151
      %p153 = scmp.eq.s32.totalorder %s17, 0
      %p154 = por %p152, %p153
      %p155 = scmp.le.s32.totalorder 1, %s11
      %p156 = scmp.lt.s32.totalorder %s11, 3
      %p157 = pnand %p155, %p156
      %p158 = pneg %p157
      // Predicated region
      $region9: #{tablock_forward.1} parent=5 // pred_check
        _
      $region10: #{tablock_forward.1} parent=5 // pred_check_branch
        %160 = sbr.rel (%p157) target = $region12
      $region11: #{tablock_forward.1} parent=5 // pred_region
        %s161 = ssub.s32 %s11, 1
        // Predicated region
        $region13: #{tablock_forward.1} parent=11 // pred_check
          %p162 = pneg %p98
        $region14: #{tablock_forward.1} parent=11 // pred_check_branch
          %164 = sbr.rel (%p162) target = $region16
        $region15: #{tablock_forward.1} parent=11 // pred_region
          %s166 = ssub.s32 1536, 1536
          %167 = vsyncadd [#allocation6], %s166
          %s168 = sshll.u32 [#allocation5], 4
          %s169 = int_to_ptr.vmem [resolvable:$true] %s168
          %174 = dma.hbm_to_vmem [thread:$0]  %s2, 1536, %s169, [#allocation6], 128, 128, 8
        $region16: #{tablock_forward.1} parent=11 // pred_fallthru
          _
        // Predicated region
        $region17: #{tablock_forward.1} parent=11 // pred_check
          %p175 = pneg %p119
        $region18: #{tablock_forward.1} parent=11 // pred_check_branch
          %177 = sbr.rel (%p175) target = $region20
        $region19: #{tablock_forward.1} parent=11 // pred_region
          _
        $region20: #{tablock_forward.1} parent=11 // pred_fallthru
          _
      $region12: #{tablock_forward.1} parent=5 // pred_fallthru
        _
      %p178 = scmp.lt.s32.totalorder %s11, 2
      // Predicated region
      $region21: #{tablock_forward.1} parent=5 // pred_check
        %p179 = pneg %p178
      $region22: #{tablock_forward.1} parent=5 // pred_check_branch
        %181 = sbr.rel (%p179) target = $region24
      $region23: #{tablock_forward.1} parent=5 // pred_region
        // Predicated region
        $region25: #{tablock_forward.1} parent=23 // pred_check
          %p182 = pneg %p43
        $region26: #{tablock_forward.1} parent=23 // pred_check_branch
          %184 = sbr.rel (%p182) target = $region28
        $region27: #{tablock_forward.1} parent=23 // pred_region
          %p185 = scmp.lt.s32.totalorder %s18, 1
          %s186 = scalar_select %p185, %s18, 1
          %s187 = smul.addr %s186, 8
          %s188 = scalar_lea.vmem %s0, %s187
        $region28: #{tablock_forward.1} parent=23 // pred_fallthru
          _
        // Predicated region
        $region29: #{tablock_forward.1} parent=23 // pred_check
          %p189 = pneg %p71
        $region30: #{tablock_forward.1} parent=23 // pred_check_branch
          %191 = sbr.rel (%p189) target = $region32
        $region31: #{tablock_forward.1} parent=23 // pred_region
          %p192 = scmp.lt.s32.totalorder %s18, 1
          %s193 = scalar_select %p192, %s18, 1
          %p194 = scmp.lt.s32.totalorder %s19, 0
          %s195 = scalar_select %p194, %s19, 0
          %s196 = smul.addr %s193, 4
          %s197 = sadd.s32 %s195, %s196
          %s198 = smul.addr %s197, 8
          %s199 = scalar_lea.vmem %s1, %s198
        $region32: #{tablock_forward.1} parent=23 // pred_fallthru
          _
      $region24: #{tablock_forward.1} parent=5 // pred_fallthru
        _
      %p200 = scmp.le.s32.totalorder 1, %s11
      %p201 = scmp.lt.s32.totalorder %s11, 3
      %p202 = pnand %p200, %p201
      %p203 = pneg %p202
      // Predicated region
      $region33: #{tablock_forward.1} parent=5 // pred_check
        _
      $region34: #{tablock_forward.1} parent=5 // pred_check_branch
        %205 = sbr.rel (%p202) target = $region36
      $region35: #{tablock_forward.1} parent=5 // pred_region
        %s206 = ssub.s32 %s11, 1
        // Predicated region
        $region37: #{tablock_forward.1} parent=35 // pred_check
          %p207 = pneg %p98
        $region38: #{tablock_forward.1} parent=35 // pred_check_branch
          %209 = sbr.rel (%p207) target = $region40
        $region39: #{tablock_forward.1} parent=35 // pred_region
          %210 = dma.done [#allocation6], 1536
        $region40: #{tablock_forward.1} parent=35 // pred_fallthru
          _
        %p211 = scmp.lt.s32.totalorder %s20, 1
        %s212 = scalar_select %p211, %s20, 1
        %s213 = smul.addr %s212, 8
        %s214 = scalar_lea.vmem %s0, %s213
        %p215 = pneg %p49
        %p216 = pneg %p46
        %p217 = scmp.lt.s32.totalorder %s20, 1
        %s218 = scalar_select %p217, %s20, 1
        %p219 = scmp.lt.s32.totalorder %s21, 0
        %s220 = scalar_select %p219, %s21, 0
        %s221 = smul.addr %s218, 4
        %s222 = sadd.s32 %s220, %s221
        %s223 = smul.addr %s222, 8
        %s224 = scalar_lea.vmem %s1, %s223
        %p225 = pneg %p77
        %p226 = pneg %p74
        %p227 = pneg %p98
        %p228 = pneg %p95
        %p229 = pneg %p119
        %p230 = pneg %p116
        %p231 = pneg %p147
        %p232 = pneg %p144
        %p233 = scmp.lt.s32.totalorder %s20, 1
        %s234 = scalar_select %p233, %s20, 1
        %p235 = scmp.lt.s32.totalorder %s21, 0
        %s236 = scalar_select %p235, %s21, 0
        %s237 = smul.addr %s234, 4
        %s238 = sadd.s32 %s236, %s237
        %s239 = smul.addr %s238, 8
        %s240 = scalar_lea.vmem %s4, %s239
        %p241 = scmp.lt.s32.totalorder %s20, 1
        %s242 = scalar_select %p241, %s20, 1
        %s243 = smul.addr %s242, 8
        %s244 = scalar_lea.vmem %s0, %s243
        %p245 = scmp.lt.s32.totalorder %s20, 1
        %s246 = scalar_select %p245, %s20, 1
        %p247 = scmp.lt.s32.totalorder %s21, 0
        %s248 = scalar_select %p247, %s21, 0
        %s249 = smul.addr %s246, 4
        %s250 = sadd.s32 %s248, %s249
        %s251 = smul.addr %s250, 8
        %s252 = scalar_lea.vmem %s1, %s251
        %p253 = scmp.lt.s32.totalorder %s20, 1
        %s254 = scalar_select %p253, %s20, 1
        %p255 = scmp.lt.s32.totalorder %s21, 0
        %s256 = scalar_select %p255, %s21, 0
        %s257 = smul.addr %s254, 4
        %s258 = sadd.s32 %s256, %s257
        %s259 = smul.addr %s258, 8
        %s260 = scalar_lea.vmem %s4, %s259
        %p261 = scmp.eq.s32.totalorder %s21, 0
        // Predicated region
        $region41: #{tablock_forward.1} parent=35 // pred_check
          %p262 = pneg %p261
        $region42: #{tablock_forward.1} parent=35 // pred_check_branch
          %264 = sbr.rel (%p262) target = $region44
        $region43: #{tablock_forward.1} parent=35 // pred_region
          %v265 = vld [vmem:[%s244] sm:$0xff]
          %v266 = vld [vmem:[#allocation5] sm:$0xff]
          %v267 = vld [vmem:[#allocation5 + $0x8] sm:$0xff]
          %v268 = vld [vmem:[#allocation5 + $0x10] sm:$0xff]
          %v269 = vld [vmem:[#allocation5 + $0x18] sm:$0xff]
          %v270 = vld [vmem:[%s3] sm:$0x1]
          %v272 = vlaneseq
          %v273 = vshrl.u32 %v272, 7
          %v274 = vsub.s32 0, %v273
          %v275 = vrot.slane %v270, %v274
          %vm277 = vcmask 261120
          %v279 = vsel %vm277, %v265, 0
          %281 = vmatprep.subr.mxu0 0.0
          %282 = vmatpush1.msra.mxu0 %v266
          %283 = vmatprep.subr.mxu0 0.0
          %284 = vmatpush1.msra.mxu0 %v267
          %285 = vmatprep.subr.mxu0 0.0
          %286 = vmatpush1.msra.mxu0 %v268
          %287 = vmatprep.subr.mxu0 0.0
          %288 = vmatpush1.msra.mxu0 %v269
          %289 = vmatprep.subr.mxu0 0.0
          %290 = vmatpush1.msra.mxu0 0.0
          %291 = vmatprep.subr.mxu0 0.0
          %292 = vmatpush1.msra.mxu0 0.0
          %293 = vmatprep.subr.mxu0 0.0
          %294 = vmatpush1.msra.mxu0 0.0
          %295 = vmatprep.subr.mxu0 0.0
          %296 = vmatpush1.msra.mxu0 0.0
          %297 = vmatprep.subr.mxu0 0.0
          %298 = vmatpush1.msra.mxu0 0.0
          %299 = vmatprep.subr.mxu0 0.0
          %300 = vmatpush1.msra.mxu0 0.0
          %301 = vmatprep.subr.mxu0 0.0
          %302 = vmatpush1.msra.mxu0 0.0
          %303 = vmatprep.subr.mxu0 0.0
          %304 = vmatpush1.msra.mxu0 0.0
          %305 = vmatprep.subr.mxu0 0.0
          %306 = vmatpush1.msra.mxu0 0.0
          %307 = vmatprep.subr.mxu0 0.0
          %308 = vmatpush1.msra.mxu0 0.0
          %309 = vmatprep.subr.mxu0 0.0
          %310 = vmatpush1.msra.mxu0 0.0
          %311 = vmatprep.subr.mxu0 0.0
          %312 = vmatpush1.msra.mxu0 0.0
          %313 = vmatprep.subr.mxu0 0.0
          %314 = vmatpush1.msra.mxu0 0.0
          %315 = vmatprep.subr.mxu0 0.0
          %316 = vmatpush1.msra.mxu0 0.0
          %317 = vmatprep.subr.mxu0 0.0
          %318 = vmatpush1.msra.mxu0 0.0
          %319 = vmatprep.subr.mxu0 0.0
          %320 = vmatpush1.msra.mxu0 0.0
          %321 = vmatprep.subr.mxu0 0.0
          %322 = vmatpush1.msra.mxu0 0.0
          %323 = vmatprep.subr.mxu0 0.0
          %324 = vmatpush1.msra.mxu0 0.0
          %325 = vmatprep.subr.mxu0 0.0
          %326 = vmatpush1.msra.mxu0 0.0
          %327 = vmatprep.subr.mxu0 0.0
          %328 = vmatpush1.msra.mxu0 0.0
          %329 = vmatprep.subr.mxu0 0.0
          %330 = vmatpush1.msra.mxu0 0.0
          %331 = vmatprep.subr.mxu0 0.0
          %332 = vmatpush1.msra.mxu0 0.0
          %333 = vmatprep.subr.mxu0 0.0
          %334 = vmatpush1.msra.mxu0 0.0
          %335 = vmatprep.subr.mxu0 0.0
          %336 = vmatpush1.msra.mxu0 0.0
          %337 = vmatprep.subr.mxu0 0.0
          %338 = vmatpush1.msra.mxu0 0.0
          %339 = vmatprep.subr.mxu0 0.0
          %340 = vmatpush1.msra.mxu0 0.0
          %341 = vmatprep.subr.mxu0 0.0
          %342 = vmatpush1.msra.mxu0 0.0
          %343 = vmatprep.subr.mxu0 0.0
          %344 = vmatpush1.msra.mxu0 0.0
          %345 = vmatprep.mubr.f32.mxu0 0.0
          %346 = vmatmul.mubr.f32.gmra.mrb[0].mxu0 %v279
          %v347 = vpop.f32.mrb[0].mxu0
          %v348 = vadd.f32 %v275, %v347
          %v349 = vpop.f32.mrb[0].mxu0
          %350 = vdwg.mxu0
          %351 = vst.msk [vmem:[#allocation2] sm:$0xff] %vm277, %v348
          %s352 = scalar_lea.vmem [#allocation5], 32
          %v353 = vld [vmem:[%s352] sm:$0xff]
          %v354 = vld [vmem:[%s352 + $0x8] sm:$0xff]
          %v355 = vld [vmem:[%s352 + $0x10] sm:$0xff]
          %v356 = vld [vmem:[%s352 + $0x18] sm:$0xff]
          %s357 = scalar_lea.vmem %s3, 1
          %v358 = vld [vmem:[%s357] sm:$0x1]
          %v360 = vlaneseq
          %v361 = vshrl.u32 %v360, 7
          %v362 = vsub.s32 0, %v361
          %v363 = vrot.slane %v358, %v362
          %365 = vmatprep.subr.mxu0 0.0
          %366 = vmatpush1.msra.mxu0 %v353
          %367 = vmatprep.subr.mxu0 0.0
          %368 = vmatpush1.msra.mxu0 %v354
          %369 = vmatprep.subr.mxu0 0.0
          %370 = vmatpush1.msra.mxu0 %v355
          %371 = vmatprep.subr.mxu0 0.0
          %372 = vmatpush1.msra.mxu0 %v356
          %373 = vmatprep.subr.mxu0 0.0
          %374 = vmatpush1.msra.mxu0 0.0
          %375 = vmatprep.subr.mxu0 0.0
          %376 = vmatpush1.msra.mxu0 0.0
          %377 = vmatprep.subr.mxu0 0.0
          %378 = vmatpush1.msra.mxu0 0.0
          %379 = vmatprep.subr.mxu0 0.0
          %380 = vmatpush1.msra.mxu0 0.0
          %381 = vmatprep.subr.mxu0 0.0
          %382 = vmatpush1.msra.mxu0 0.0
          %383 = vmatprep.subr.mxu0 0.0
          %384 = vmatpush1.msra.mxu0 0.0
          %385 = vmatprep.subr.mxu0 0.0
          %386 = vmatpush1.msra.mxu0 0.0
          %387 = vmatprep.subr.mxu0 0.0
          %388 = vmatpush1.msra.mxu0 0.0
          %389 = vmatprep.subr.mxu0 0.0
          %390 = vmatpush1.msra.mxu0 0.0
          %391 = vmatprep.subr.mxu0 0.0
          %392 = vmatpush1.msra.mxu0 0.0
          %393 = vmatprep.subr.mxu0 0.0
          %394 = vmatpush1.msra.mxu0 0.0
          %395 = vmatprep.subr.mxu0 0.0
          %396 = vmatpush1.msra.mxu0 0.0
          %397 = vmatprep.subr.mxu0 0.0
          %398 = vmatpush1.msra.mxu0 0.0
          %399 = vmatprep.subr.mxu0 0.0
          %400 = vmatpush1.msra.mxu0 0.0
          %401 = vmatprep.subr.mxu0 0.0
          %402 = vmatpush1.msra.mxu0 0.0
          %403 = vmatprep.subr.mxu0 0.0
          %404 = vmatpush1.msra.mxu0 0.0
          %405 = vmatprep.subr.mxu0 0.0
          %406 = vmatpush1.msra.mxu0 0.0
          %407 = vmatprep.subr.mxu0 0.0
          %408 = vmatpush1.msra.mxu0 0.0
          %409 = vmatprep.subr.mxu0 0.0
          %410 = vmatpush1.msra.mxu0 0.0
          %411 = vmatprep.subr.mxu0 0.0
          %412 = vmatpush1.msra.mxu0 0.0
          %413 = vmatprep.subr.mxu0 0.0
          %414 = vmatpush1.msra.mxu0 0.0
          %415 = vmatprep.subr.mxu0 0.0
          %416 = vmatpush1.msra.mxu0 0.0
          %417 = vmatprep.subr.mxu0 0.0
          %418 = vmatpush1.msra.mxu0 0.0
          %419 = vmatprep.subr.mxu0 0.0
          %420 = vmatpush1.msra.mxu0 0.0
          %421 = vmatprep.subr.mxu0 0.0
          %422 = vmatpush1.msra.mxu0 0.0
          %423 = vmatprep.subr.mxu0 0.0
          %424 = vmatpush1.msra.mxu0 0.0
          %425 = vmatprep.subr.mxu0 0.0
          %426 = vmatpush1.msra.mxu0 0.0
          %427 = vmatprep.subr.mxu0 0.0
          %428 = vmatpush1.msra.mxu0 0.0
          %429 = vmatprep.mubr.f32.mxu0 0.0
          %430 = vmatmul.mubr.f32.gmra.mrb[0].mxu0 %v279
          %v431 = vpop.f32.mrb[0].mxu0
          %v432 = vadd.f32 %v363, %v431
          %v433 = vpop.f32.mrb[0].mxu0
          %434 = vdwg.mxu0
          %435 = vst.msk [vmem:[#allocation3] sm:$0xff] %vm277, %v432
          %s436 = scalar_lea.vmem [#allocation5], 64
          %v437 = vld [vmem:[%s436] sm:$0xff]
          %v438 = vld [vmem:[%s436 + $0x8] sm:$0xff]
          %v439 = vld [vmem:[%s436 + $0x10] sm:$0xff]
          %v440 = vld [vmem:[%s436 + $0x18] sm:$0xff]
          %s441 = scalar_lea.vmem %s3, 2
          %v442 = vld [vmem:[%s441] sm:$0x1]
          %v444 = vlaneseq
          %v445 = vshrl.u32 %v444, 7
          %v446 = vsub.s32 0, %v445
          %v447 = vrot.slane %v442, %v446
          %449 = vmatprep.subr.mxu0 0.0
          %450 = vmatpush1.msra.mxu0 %v437
          %451 = vmatprep.subr.mxu0 0.0
          %452 = vmatpush1.msra.mxu0 %v438
          %453 = vmatprep.subr.mxu0 0.0
          %454 = vmatpush1.msra.mxu0 %v439
          %455 = vmatprep.subr.mxu0 0.0
          %456 = vmatpush1.msra.mxu0 %v440
          %457 = vmatprep.subr.mxu0 0.0
          %458 = vmatpush1.msra.mxu0 0.0
          %459 = vmatprep.subr.mxu0 0.0
          %460 = vmatpush1.msra.mxu0 0.0
          %461 = vmatprep.subr.mxu0 0.0
          %462 = vmatpush1.msra.mxu0 0.0
          %463 = vmatprep.subr.mxu0 0.0
          %464 = vmatpush1.msra.mxu0 0.0
          %465 = vmatprep.subr.mxu0 0.0
          %466 = vmatpush1.msra.mxu0 0.0
          %467 = vmatprep.subr.mxu0 0.0
          %468 = vmatpush1.msra.mxu0 0.0
          %469 = vmatprep.subr.mxu0 0.0
          %470 = vmatpush1.msra.mxu0 0.0
          %471 = vmatprep.subr.mxu0 0.0
          %472 = vmatpush1.msra.mxu0 0.0
          %473 = vmatprep.subr.mxu0 0.0
          %474 = vmatpush1.msra.mxu0 0.0
          %475 = vmatprep.subr.mxu0 0.0
          %476 = vmatpush1.msra.mxu0 0.0
          %477 = vmatprep.subr.mxu0 0.0
          %478 = vmatpush1.msra.mxu0 0.0
          %479 = vmatprep.subr.mxu0 0.0
          %480 = vmatpush1.msra.mxu0 0.0
          %481 = vmatprep.subr.mxu0 0.0
          %482 = vmatpush1.msra.mxu0 0.0
          %483 = vmatprep.subr.mxu0 0.0
          %484 = vmatpush1.msra.mxu0 0.0
          %485 = vmatprep.subr.mxu0 0.0
          %486 = vmatpush1.msra.mxu0 0.0
          %487 = vmatprep.subr.mxu0 0.0
          %488 = vmatpush1.msra.mxu0 0.0
          %489 = vmatprep.subr.mxu0 0.0
          %490 = vmatpush1.msra.mxu0 0.0
          %491 = vmatprep.subr.mxu0 0.0
          %492 = vmatpush1.msra.mxu0 0.0
          %493 = vmatprep.subr.mxu0 0.0
          %494 = vmatpush1.msra.mxu0 0.0
          %495 = vmatprep.subr.mxu0 0.0
          %496 = vmatpush1.msra.mxu0 0.0
          %497 = vmatprep.subr.mxu0 0.0
          %498 = vmatpush1.msra.mxu0 0.0
          %499 = vmatprep.subr.mxu0 0.0
          %500 = vmatpush1.msra.mxu0 0.0
          %501 = vmatprep.subr.mxu0 0.0
          %502 = vmatpush1.msra.mxu0 0.0
          %503 = vmatprep.subr.mxu0 0.0
          %504 = vmatpush1.msra.mxu0 0.0
          %505 = vmatprep.subr.mxu0 0.0
          %506 = vmatpush1.msra.mxu0 0.0
          %507 = vmatprep.subr.mxu0 0.0
          %508 = vmatpush1.msra.mxu0 0.0
          %509 = vmatprep.subr.mxu0 0.0
          %510 = vmatpush1.msra.mxu0 0.0
          %511 = vmatprep.subr.mxu0 0.0
          %512 = vmatpush1.msra.mxu0 0.0
          %513 = vmatprep.mubr.f32.mxu0 0.0
          %514 = vmatmul.mubr.f32.gmra.mrb[0].mxu0 %v279
          %v515 = vpop.f32.mrb[0].mxu0
          %v516 = vadd.f32 %v447, %v515
          %v517 = vpop.f32.mrb[0].mxu0
          %518 = vdwg.mxu0
          %519 = vst.msk [vmem:[#allocation4] sm:$0xff] %vm277, %v516
        $region44: #{tablock_forward.1} parent=35 // pred_fallthru
          _
        %s520 = smul.u32 %s21, 8
        %s521 = scalar_lea.vmem [#allocation2], %s520
        %v522 = vld [vmem:[%s521] sm:$0xff]
        %v523 = vld [vmem:[#allocation3] sm:$0xff]
        %vm524 = vcmask 261120
        %v526 = vsel %vm524, %v522, 0
        %v529 = vsel %vm524, %v523, 0
        %531 = vmatprep.subr.mxu0 0.0
        %532 = vmatpush1.xpose.msra.mxu0 %v529
        %533 = vmatprep.subr.mxu0 0.0
        %534 = vmatpush1.xpose.msra.mxu0 0.0
        %535 = vmatprep.subr.mxu0 0.0
        %536 = vmatpush1.xpose.msra.mxu0 0.0
        %537 = vmatprep.subr.mxu0 0.0
        %538 = vmatpush1.xpose.msra.mxu0 0.0
        %539 = vmatprep.subr.mxu0 0.0
        %540 = vmatpush1.xpose.msra.mxu0 0.0
        %541 = vmatprep.subr.mxu0 0.0
        %542 = vmatpush1.xpose.msra.mxu0 0.0
        %543 = vmatprep.subr.mxu0 0.0
        %544 = vmatpush1.xpose.msra.mxu0 0.0
        %545 = vmatprep.subr.mxu0 0.0
        %546 = vmatpush1.xpose.msra.mxu0 0.0
        %547 = vmatprep.subr.mxu0 0.0
        %548 = vmatpush1.xpose.msra.mxu0 0.0
        %549 = vmatprep.subr.mxu0 0.0
        %550 = vmatpush1.xpose.msra.mxu0 0.0
        %551 = vmatprep.subr.mxu0 0.0
        %552 = vmatpush1.xpose.msra.mxu0 0.0
        %553 = vmatprep.subr.mxu0 0.0
        %554 = vmatpush1.xpose.msra.mxu0 0.0
        %555 = vmatprep.subr.mxu0 0.0
        %556 = vmatpush1.xpose.msra.mxu0 0.0
        %557 = vmatprep.subr.mxu0 0.0
        %558 = vmatpush1.xpose.msra.mxu0 0.0
        %559 = vmatprep.subr.mxu0 0.0
        %560 = vmatpush1.xpose.msra.mxu0 0.0
        %561 = vmatprep.subr.mxu0 0.0
        %562 = vmatpush1.xpose.msra.mxu0 0.0
        %563 = vmatprep.subr.mxu0 0.0
        %564 = vmatpush1.xpose.msra.mxu0 0.0
        %565 = vmatprep.subr.mxu0 0.0
        %566 = vmatpush1.xpose.msra.mxu0 0.0
        %567 = vmatprep.subr.mxu0 0.0
        %568 = vmatpush1.xpose.msra.mxu0 0.0
        %569 = vmatprep.subr.mxu0 0.0
        %570 = vmatpush1.xpose.msra.mxu0 0.0
        %571 = vmatprep.subr.mxu0 0.0
        %572 = vmatpush1.xpose.msra.mxu0 0.0
        %573 = vmatprep.subr.mxu0 0.0
        %574 = vmatpush1.xpose.msra.mxu0 0.0
        %575 = vmatprep.subr.mxu0 0.0
        %576 = vmatpush1.xpose.msra.mxu0 0.0
        %577 = vmatprep.subr.mxu0 0.0
        %578 = vmatpush1.xpose.msra.mxu0 0.0
        %579 = vmatprep.subr.mxu0 0.0
        %580 = vmatpush1.xpose.msra.mxu0 0.0
        %581 = vmatprep.subr.mxu0 0.0
        %582 = vmatpush1.xpose.msra.mxu0 0.0
        %583 = vmatprep.subr.mxu0 0.0
        %584 = vmatpush1.xpose.msra.mxu0 0.0
        %585 = vmatprep.subr.mxu0 0.0
        %586 = vmatpush1.xpose.msra.mxu0 0.0
        %587 = vmatprep.subr.mxu0 0.0
        %588 = vmatpush1.xpose.msra.mxu0 0.0
        %589 = vmatprep.subr.mxu0 0.0
        %590 = vmatpush1.xpose.msra.mxu0 0.0
        %591 = vmatprep.subr.mxu0 0.0
        %592 = vmatpush1.xpose.msra.mxu0 0.0
        %593 = vmatprep.subr.mxu0 0.0
        %594 = vmatpush1.xpose.msra.mxu0 0.0
        %595 = vmatprep.mubr.f32.mxu0 0.0
        %596 = vmatmul.mubr.f32.gmra.mrb[0].mxu0 %v526
        %v597 = vpop.f32.mrb[0].mxu0
        %v598 = vadd.f32 0.0, %v597
        %v599 = vpop.f32.mrb[0].mxu0
        %600 = vdwg.mxu0
        %vm601 = vcmask 64512
        %v602 = vsel %vm601, %v598, -inf
        %603 = vmax.xlane.f32.xlu0 %v602
        %v604 = vpop.xlane.xlu0 %603
        %v605 = vsub.f32 %v598, %v604
        %v606 = vmul.f32 %v605, 1.442695
        %v607 = vpow.pop %v606
        %v608 = vsel %vm601, %v607, 0.0
        %609 = vadd.xlane.f32.xlu0 %v608
        %v610 = vpop.xlane.xlu0 %609
        %v611 = vrcp.pop %v610
        %v612 = vmul.f32 %v607, %v611
        %v613 = vld [vmem:[#allocation4] sm:$0xff]
        %v614 = vld [vmem:[%s252] sm:$0xff]
        %v615 = vld [vmem:[%s252 + $0x8] sm:$0xff]
        %v616 = vld [vmem:[%s252 + $0x10] sm:$0xff]
        %v617 = vld [vmem:[%s252 + $0x18] sm:$0xff]
        %618 = vxpose.xlu0.b32.start [1/16] %v613, 128
        %619 = vxpose.xlu0.b32.cont [2/16] 0.0, 128
        %620 = vxpose.xlu0.b32.cont [3/16] 0.0, 128
        %621 = vxpose.xlu0.b32.cont [4/16] 0.0, 128
        %622 = vxpose.xlu0.b32.cont [5/16] 0.0, 128
        %623 = vxpose.xlu0.b32.cont [6/16] 0.0, 128
        %624 = vxpose.xlu0.b32.cont [7/16] 0.0, 128
        %625 = vxpose.xlu0.b32.cont [8/16] 0.0, 128
        %626 = vxpose.xlu0.b32.cont [9/16] 0.0, 128
        %627 = vxpose.xlu0.b32.cont [10/16] 0.0, 128
        %628 = vxpose.xlu0.b32.cont [11/16] 0.0, 128
        %629 = vxpose.xlu0.b32.cont [12/16] 0.0, 128
        %630 = vxpose.xlu0.b32.cont [13/16] 0.0, 128
        %631 = vxpose.xlu0.b32.cont [14/16] 0.0, 128
        %632 = vxpose.xlu0.b32.cont [15/16] 0.0, 128
        %633 = vxpose.xlu0.b32.end [16/16] 0.0, 128
        %v634 = vpop.trf.xlu0
        %v635 = vpop.trf.xlu0
        %v636 = vpop.trf.xlu0
        %v637 = vpop.trf.xlu0
        %v638 = vpop.trf.xlu0
        %v639 = vpop.trf.xlu0
        %v640 = vpop.trf.xlu0
        %v641 = vpop.trf.xlu0
        %v642 = vpop.trf.xlu0
        %v643 = vpop.trf.xlu0
        %v644 = vpop.trf.xlu0
        %v645 = vpop.trf.xlu0
        %v646 = vpop.trf.xlu0
        %v647 = vpop.trf.xlu0
        %v648 = vpop.trf.xlu0
        %v649 = vpop.trf.xlu0
        %v651 = vsel %vm601, %v634, 0
        %v654 = vsel %vm601, %v635, 0
        %v657 = vsel %vm601, %v636, 0
        %v660 = vsel %vm601, %v637, 0
        %v663 = vsel %vm601, %v612, 0
        %665 = vmatprep.subr.mxu0 0.0
        %666 = vmatpush1.xpose.msra.mxu0 %v663
        %667 = vmatprep.subr.mxu0 0.0
        %668 = vmatpush1.xpose.msra.mxu0 0.0
        %669 = vmatprep.subr.mxu0 0.0
        %670 = vmatpush1.xpose.msra.mxu0 0.0
        %671 = vmatprep.subr.mxu0 0.0
        %672 = vmatpush1.xpose.msra.mxu0 0.0
        %673 = vmatprep.subr.mxu0 0.0
        %674 = vmatpush1.xpose.msra.mxu0 0.0
        %675 = vmatprep.subr.mxu0 0.0
        %676 = vmatpush1.xpose.msra.mxu0 0.0
        %677 = vmatprep.subr.mxu0 0.0
        %678 = vmatpush1.xpose.msra.mxu0 0.0
        %679 = vmatprep.subr.mxu0 0.0
        %680 = vmatpush1.xpose.msra.mxu0 0.0
        %681 = vmatprep.subr.mxu0 0.0
        %682 = vmatpush1.xpose.msra.mxu0 0.0
        %683 = vmatprep.subr.mxu0 0.0
        %684 = vmatpush1.xpose.msra.mxu0 0.0
        %685 = vmatprep.subr.mxu0 0.0
        %686 = vmatpush1.xpose.msra.mxu0 0.0
        %687 = vmatprep.subr.mxu0 0.0
        %688 = vmatpush1.xpose.msra.mxu0 0.0
        %689 = vmatprep.subr.mxu0 0.0
        %690 = vmatpush1.xpose.msra.mxu0 0.0
        %691 = vmatprep.subr.mxu0 0.0
        %692 = vmatpush1.xpose.msra.mxu0 0.0
        %693 = vmatprep.subr.mxu0 0.0
        %694 = vmatpush1.xpose.msra.mxu0 0.0
        %695 = vmatprep.subr.mxu0 0.0
        %696 = vmatpush1.xpose.msra.mxu0 0.0
        %697 = vmatprep.subr.mxu0 0.0
        %698 = vmatpush1.xpose.msra.mxu0 0.0
        %699 = vmatprep.subr.mxu0 0.0
        %700 = vmatpush1.xpose.msra.mxu0 0.0
        %701 = vmatprep.subr.mxu0 0.0
        %702 = vmatpush1.xpose.msra.mxu0 0.0
        %703 = vmatprep.subr.mxu0 0.0
        %704 = vmatpush1.xpose.msra.mxu0 0.0
        %705 = vmatprep.subr.mxu0 0.0
        %706 = vmatpush1.xpose.msra.mxu0 0.0
        %707 = vmatprep.subr.mxu0 0.0
        %708 = vmatpush1.xpose.msra.mxu0 0.0
        %709 = vmatprep.subr.mxu0 0.0
        %710 = vmatpush1.xpose.msra.mxu0 0.0
        %711 = vmatprep.subr.mxu0 0.0
        %712 = vmatpush1.xpose.msra.mxu0 0.0
        %713 = vmatprep.subr.mxu0 0.0
        %714 = vmatpush1.xpose.msra.mxu0 0.0
        %715 = vmatprep.subr.mxu0 0.0
        %716 = vmatpush1.xpose.msra.mxu0 0.0
        %717 = vmatprep.subr.mxu0 0.0
        %718 = vmatpush1.xpose.msra.mxu0 0.0
        %719 = vmatprep.subr.mxu0 0.0
        %720 = vmatpush1.xpose.msra.mxu0 0.0
        %721 = vmatprep.subr.mxu0 0.0
        %722 = vmatpush1.xpose.msra.mxu0 0.0
        %723 = vmatprep.subr.mxu0 0.0
        %724 = vmatpush1.xpose.msra.mxu0 0.0
        %725 = vmatprep.subr.mxu0 0.0
        %726 = vmatpush1.xpose.msra.mxu0 0.0
        %727 = vmatprep.subr.mxu0 0.0
        %728 = vmatpush1.xpose.msra.mxu0 0.0
        %729 = vmatprep.mubr.f32.mxu0 0.0
        %730 = vmatmul.mubr.f32.gmra.mrb[0].mxu0 %v651
        %v731 = vpop.f32.mrb[0].mxu0
        %v732 = vadd.f32 %v614, %v731
        %v733 = vpop.f32.mrb[0].mxu0
        %734 = vmatprep.mubr.f32.mxu0 0.0
        %735 = vmatmul.mubr.f32.gmra.mrb[0].mxu0 %v654
        %v736 = vpop.f32.mrb[0].mxu0
        %v737 = vadd.f32 %v615, %v736
        %v738 = vpop.f32.mrb[0].mxu0
        %739 = vmatprep.mubr.f32.mxu0 0.0
        %740 = vmatmul.mubr.f32.gmra.mrb[0].mxu0 %v657
        %v741 = vpop.f32.mrb[0].mxu0
        %v742 = vadd.f32 %v616, %v741
        %v743 = vpop.f32.mrb[0].mxu0
        %744 = vmatprep.mubr.f32.mxu0 0.0
        %745 = vmatmul.mubr.f32.gmra.mrb[0].mxu0 %v660
        %v746 = vpop.f32.mrb[0].mxu0
        %v747 = vadd.f32 %v617, %v746
        %v748 = vpop.f32.mrb[0].mxu0
        %749 = vdwg.mxu0
        %750 = vst.msk [vmem:[%s260] sm:$0xff] %vm601, %v732
        %751 = vst.msk [vmem:[%s260 + $0x8] sm:$0xff] %vm601, %v737
        %752 = vst.msk [vmem:[%s260 + $0x10] sm:$0xff] %vm601, %v742
        %753 = vst.msk [vmem:[%s260 + $0x18] sm:$0xff] %vm601, %v747
        %p754 = scmp.lt.s32.totalorder %s20, 1
        %s755 = scalar_select %p754, %s20, 1
        %p756 = scmp.lt.s32.totalorder %s21, 0
        %s757 = scalar_select %p756, %s21, 0
        %s758 = smul.addr %s755, 4
        %s759 = sadd.s32 %s757, %s758
        %s760 = smul.addr %s759, 8
        %s761 = scalar_lea.vmem %s4, %s760
        // Predicated region
        $region45: #{tablock_forward.1} parent=35 // pred_check
          %p762 = pneg %p144
        $region46: #{tablock_forward.1} parent=35 // pred_check_branch
          %764 = sbr.rel (%p762) target = $region48
        $region47: #{tablock_forward.1} parent=35 // pred_region
          _
        $region48: #{tablock_forward.1} parent=35 // pred_fallthru
          _
      $region36: #{tablock_forward.1} parent=5 // pred_fallthru
        _
      %p765 = scmp.le.s32.totalorder 2, %s11
      // Predicated region
      $region49: #{tablock_forward.1} parent=5 // pred_check
        %p766 = pneg %p765
      $region50: #{tablock_forward.1} parent=5 // pred_check_branch
        %768 = sbr.rel (%p766) target = $region52
      $region51: #{tablock_forward.1} parent=5 // pred_region
        %s769 = ssub.s32 %s11, 2
        // Predicated region
        $region53: #{tablock_forward.1} parent=51 // pred_check
          %p770 = pneg %p150
        $region54: #{tablock_forward.1} parent=51 // pred_check_branch
          %772 = sbr.rel (%p770) target = $region56
        $region55: #{tablock_forward.1} parent=51 // pred_region
          %p773 = scmp.lt.s32.totalorder %s22, 1
          %s774 = scalar_select %p773, %s22, 1
          %p775 = scmp.lt.s32.totalorder %s23, 0
          %s776 = scalar_select %p775, %s23, 0
          %s777 = smul.addr %s774, 4
          %s778 = sadd.s32 %s776, %s777
          %s779 = smul.addr %s778, 8
          %s780 = scalar_lea.vmem %s4, %s779
        $region56: #{tablock_forward.1} parent=51 // pred_fallthru
          _
      $region52: #{tablock_forward.1} parent=5 // pred_fallthru
        _
    $region6: #{tablock_forward.1} parent=1 // loop_footer
      %s15 = sadd.s32 1, %s11
    $region7: #{tablock_forward.1} parent=1 // loop_footer_branch
      %10 = sbr.rel target = $region3
    $region8: #{tablock_forward.1} parent=1 // loop_exit
      _
    %781 = vsyncpa [#allocation6], 1
    %s782 = scalar_lea.sflag [#allocation6], 1
    %783 = vsyncpa %s782, 1

</llo_original>
